<compile_context>
chip_gen: v5e
topology: v5e:2x2
jax: 0.10.0
libtpu: 0.0.40
codegen_flags: <defaults>
</compile_context>

<pallas_src>
import functools

import jax
import jax.numpy as jnp
from jax import lax
from jax.experimental import pallas as pl
from jax.experimental.pallas import tpu as pltpu


def _rbf_kernel(x_ref, w1_ref, b1_ref, w2_ref, o_ref, *, mxu_dtype, exp_dtype):
    # x_ref : (2*C_in, tp)      stacked [real; imag] pixel tile (io dtype)
    # w1_ref: (2*ch, 2*C_in)    block-diag(scale_in.weight) (mxu dtype)
    # b1_ref: (2*ch, 1)         stacked scale_in.bias, f32 (lane-broadcast)
    # w2_ref: (2*C_in, 2*ch)    block-diag(scale_out.weight) (mxu dtype)
    # o_ref : (2*C_in, tp)      stacked [real; imag] output tile (io dtype)
    x = x_ref[...]
    if x.dtype != mxu_dtype:
        x = x.astype(mxu_dtype)
    # z = W1 @ x + b1  with f32 accumulation on the MXU.
    z = jnp.dot(w1_ref[...], x, preferred_element_type=jnp.float32) + b1_ref[...]
    neg_sq = -(z * z)                                  # f32 VALU
    a = jnp.exp(neg_sq.astype(exp_dtype))              # EUP (bf16 on relaxed path)
    if a.dtype != mxu_dtype:
        a = a.astype(mxu_dtype)
    o_ref[...] = jnp.dot(w2_ref[...], a,
                         preferred_element_type=jnp.float32).astype(o_ref.dtype)


def _block_diag2(m):
    z = jnp.zeros_like(m)
    return jnp.concatenate(
        [jnp.concatenate([m, z], axis=1), jnp.concatenate([z, m], axis=1)], axis=0)


def _pick_tile(P, target, min_tiles):
    """Lane-aligned pixel tile; prefers a divisor of P so no padding pass is needed."""
    if P < min_tiles * 128:
        min_tiles = 1
    if P % 128 == 0:
        q = P // 128
        cands = [d for d in range(1, q + 1)
                 if q % d == 0 and 128 * d <= target and q // d >= min_tiles]
        d = max(cands) if cands else 1
        tp = 128 * d
        return tp, P // tp, P                           # exact split, no padding
    n_tiles = max(min_tiles, -(-P // target))           # cdiv
    tp = ((-(-P // n_tiles) + 127) // 128) * 128
    return tp, n_tiles, n_tiles * tp


@functools.partial(jax.jit, static_argnames=("io_dtype", "tile_px_target"))
def radial_basis_activation(x_complex, w1, b1, w2, *, io_dtype=jnp.float32,
                            tile_px_target=16384):
    """x_complex: complex64 (N, C_in, H, W) (NCHW, like PyTorch).

    w1: (channels, C_in)  scale_in.weight[..., 0, 0]
    b1: (channels,)       scale_in.bias
    w2: (C_in, channels)  scale_out.weight[..., 0, 0]
    """
    N, C_in, H, W = x_complex.shape
    channels = w1.shape[0]
    P = H * W
    C2 = 2 * C_in

    relaxed = jnp.dtype(io_dtype) == jnp.dtype(jnp.bfloat16)
    mxu_dtype = jnp.bfloat16 if relaxed else jnp.float32
    exp_dtype = jnp.bfloat16 if relaxed else jnp.float32
    # TODO(synk): on v5e (no bf16 EUP) exp_dtype could stay f32 even on the
    # relaxed path; gating that cleanly needs a chip query (pltpu.get_tpu_info).

    # Real/imag stacked on the channel (sublane) axis in one extraction pass.
    xs = jnp.concatenate([jnp.real(x_complex), jnp.imag(x_complex)], axis=1)
    xs = xs.reshape(N, C2, P).astype(io_dtype)

    # When N == 1, force >= 2 pixel tiles so v7x's two TensorCores both work.
    min_tiles = 2 if N == 1 else 1
    tp, n_tiles, P_pad = _pick_tile(P, tile_px_target, min_tiles)
    if P_pad != P:
        xs = jnp.pad(xs, ((0, 0), (0, 0), (0, P_pad - P)))

    w1_blk = _block_diag2(w1).astype(mxu_dtype)                       # (2*ch, 2*C_in)
    w2_blk = _block_diag2(w2).astype(mxu_dtype)                       # (2*C_in, 2*ch)
    b1_blk = jnp.concatenate([b1, b1]).reshape(2 * channels, 1).astype(jnp.float32)

    x_spec = pl.BlockSpec((None, C2, tp), lambda n, p: (n, 0, p))

    kernel = functools.partial(_rbf_kernel, mxu_dtype=mxu_dtype, exp_dtype=exp_dtype)

    out = pl.pallas_call(
        kernel,
        grid=(N, n_tiles),
        in_specs=[
            x_spec,
            pl.BlockSpec((2 * channels, C2), lambda n, p: (0, 0)),
            pl.BlockSpec((2 * channels, 1), lambda n, p: (0, 0)),
            pl.BlockSpec((C2, 2 * channels), lambda n, p: (0, 0)),
        ],
        out_specs=x_spec,
        out_shape=jax.ShapeDtypeStruct((N, C2, P_pad), io_dtype),
        compiler_params=pltpu.CompilerParams(
            dimension_semantics=("parallel", "parallel"),
            vmem_limit_bytes=32 * 1024 * 1024),
    )(xs, w1_blk, b1_blk, w2_blk)

    if P_pad != P:
        out = out[:, :, :P]
    out_r = out[:, :C_in].reshape(N, C_in, H, W)
    out_i = out[:, C_in:].reshape(N, C_in, H, W)
    if out_r.dtype != jnp.float32:                      # no dead cast on f32 path
        out_r = out_r.astype(jnp.float32)
        out_i = out_i.astype(jnp.float32)
    return lax.complex(out_r, out_i)


def _reference(x_complex, w1, b1, w2):
    # Pure-JAX reference mirroring the PyTorch forward (1x1 convs == einsums).
    def scale_in(x):
        return jnp.einsum("nchw,oc->nohw", x, w1) + b1[None, :, None, None]

    def scale_out(x):
        return jnp.einsum("nchw,oc->nohw", x, w2)

    ar = jnp.exp(-scale_in(jnp.real(x_complex)) ** 2)
    ai = jnp.exp(-scale_in(jnp.imag(x_complex)) ** 2)
    return scale_out(ar) + 1j * scale_out(ai)


if __name__ == "__main__":
    key = jax.random.PRNGKey(0)
    k1, k2, k3, k4, k5 = jax.random.split(key, 5)

    N, C_in, H, W = 2, 4, 16, 16
    channels = 48

    # Deterministic synthetic parameters (Conv2d 1x1 weights collapsed to 2-D).
    w1 = jax.random.normal(k1, (channels, C_in), jnp.float32) * 0.3   # scale_in.weight
    b1 = jax.random.normal(k2, (channels,), jnp.float32) * 0.1        # scale_in.bias
    w2 = jax.random.normal(k3, (C_in, channels), jnp.float32) * 0.2   # scale_out.weight

    x = (jax.random.normal(k4, (N, C_in, H, W), jnp.float32)
         + 1j * jax.random.normal(k5, (N, C_in, H, W), jnp.float32)).astype(jnp.complex64)

    ref = _reference(x, w1, b1, w2)

    # Strict f32 path: exact module semantics (f32 MXU / f32 exp).
    out = jax.block_until_ready(radial_basis_activation(x, w1, b1, w2))
    assert out.shape == (N, C_in, H, W)
    assert out.dtype == jnp.complex64
    assert jnp.max(jnp.abs(out - ref)) < 1e-3, "f32 path mismatch vs reference"

    # Relaxed bf16 path: bf16 HBM streaming + bf16 MXU operands + bf16 exp with
    # f32 accumulation.  Compare against the reference evaluated on bf16-rounded
    # inputs/weights; outputs are also bf16-rounded before the store, hence the
    # looser tolerance.
    out_bf16 = jax.block_until_ready(
        radial_basis_activation(x, w1, b1, w2, io_dtype=jnp.bfloat16))
    bf = lambda a: a.astype(jnp.bfloat16).astype(jnp.float32)
    xq = lax.complex(bf(jnp.real(x)), bf(jnp.imag(x)))
    ref_q = _reference(xq, bf(w1), b1, bf(w2))
    assert out_bf16.shape == (N, C_in, H, W)
    assert jnp.max(jnp.abs(out_bf16 - ref_q)) < 6e-2, "bf16 path mismatch vs reference"

    print("KERNEL_OK")
</pallas_src>

<mosaic_0001>
module attributes {stable_mosaic.version = 11 : i64} {
  func.func @_rbf_kernel(%arg0: i32, %arg1: i32, %arg2: memref<1x8x256xf32, #tpu.memory_space<vmem>>, %arg3: memref<96x8xf32, #tpu.memory_space<vmem>>, %arg4: memref<96x1xf32, #tpu.memory_space<vmem>>, %arg5: memref<8x96xf32, #tpu.memory_space<vmem>>, %arg6: memref<1x8x256xf32, #tpu.memory_space<vmem>>) attributes {dimension_semantics = [#tpu.dimension_semantics<parallel>, #tpu.dimension_semantics<parallel>], iteration_bounds = array<i64: 2, 1>, scalar_prefetch = 0 : i64, scratch_operands = 0 : i64, tpu.core_type = #tpu.core_type<tc>, window_params = [{transform_indices = @transform_0, window_bounds = array<i64: 1, 8, 256>}, {pipeline_mode = #tpu.pipeline_mode<synchronous>, transform_indices = @transform_1, window_bounds = array<i64: 96, 8>}, {pipeline_mode = #tpu.pipeline_mode<synchronous>, transform_indices = @transform_2, window_bounds = array<i64: 96, 1>}, {pipeline_mode = #tpu.pipeline_mode<synchronous>, transform_indices = @transform_3, window_bounds = array<i64: 8, 96>}, {transform_indices = @transform_4, window_bounds = array<i64: 1, 8, 256>}]} {
    %c0 = arith.constant 0 : index
    %c0_0 = arith.constant 0 : index
    %c0_1 = arith.constant 0 : index
    %0 = vector.load %arg2[%c0, %c0_0, %c0_1] : memref<1x8x256xf32, #tpu.memory_space<vmem>>, vector<1x8x256xf32>
    %1 = vector.shape_cast %0 : vector<1x8x256xf32> to vector<8x256xf32>
    %c0_2 = arith.constant 0 : index
    %c0_3 = arith.constant 0 : index
    %2 = vector.load %arg3[%c0_2, %c0_3] : memref<96x8xf32, #tpu.memory_space<vmem>>, vector<96x8xf32>
    %cst = arith.constant dense<0.000000e+00> : vector<96x256xf32>
    %3 = tpu.matmul %2, %1, %cst {dimension_numbers = #tpu.dot_dimension_numbers<[1], [0], [0], [1], [0, 0, 1, 1], [], []>} : vector<96x8xf32>, vector<8x256xf32>, vector<96x256xf32> -> vector<96x256xf32>
    %c0_4 = arith.constant 0 : index
    %c0_5 = arith.constant 0 : index
    %4 = vector.load %arg4[%c0_4, %c0_5] : memref<96x1xf32, #tpu.memory_space<vmem>>, vector<96x1xf32>
    %5 = vector.broadcast %4 : vector<96x1xf32> to vector<96x256xf32>
    %6 = arith.addf %3, %5 : vector<96x256xf32>
    %7 = arith.mulf %6, %6 : vector<96x256xf32>
    %cst_6 = arith.constant 0.000000e+00 : f32
    %8 = vector.broadcast %cst_6 : f32 to vector<96x256xf32>
    %9 = arith.subf %8, %7 : vector<96x256xf32>
    %10 = math.exp %9 : vector<96x256xf32>
    %c0_7 = arith.constant 0 : index
    %c0_8 = arith.constant 0 : index
    %11 = vector.load %arg5[%c0_7, %c0_8] : memref<8x96xf32, #tpu.memory_space<vmem>>, vector<8x96xf32>
    %cst_9 = arith.constant dense<0.000000e+00> : vector<8x256xf32>
    %12 = tpu.matmul %11, %10, %cst_9 {dimension_numbers = #tpu.dot_dimension_numbers<[1], [0], [0], [1], [0, 0, 1, 1], [], []>} : vector<8x96xf32>, vector<96x256xf32>, vector<8x256xf32> -> vector<8x256xf32>
    %c0_10 = arith.constant 0 : index
    %c0_11 = arith.constant 0 : index
    %c0_12 = arith.constant 0 : index
    %13 = vector.load %arg6[%c0_10, %c0_11, %c0_12] : memref<1x8x256xf32, #tpu.memory_space<vmem>>, vector<1x8x256xf32>
    %14 = vector.shape_cast %13 : vector<1x8x256xf32> to vector<8x256xf32>
    %15 = vector.shape_cast %12 : vector<8x256xf32> to vector<1x8x256xf32>
    tpu.vector_store %arg6[%c0_10, %c0_11, %c0_12], %15 {strides = array<i32>} : memref<1x8x256xf32, #tpu.memory_space<vmem>>, vector<1x8x256xf32>,
    return
  }
  func.func @transform_0(%arg0: i32, %arg1: i32) -> (i32, i32, i32) {
    %c0_i32 = arith.constant 0 : i32
    %c0_i32_0 = arith.constant 0 : i32
    return %arg0, %c0_i32, %arg1 : i32, i32, i32
  }
  func.func @transform_1(%arg0: i32, %arg1: i32) -> (i32, i32) {
    %c0_i32 = arith.constant 0 : i32
    %c0_i32_0 = arith.constant 0 : i32
    %c0_i32_1 = arith.constant 0 : i32
    return %c0_i32, %c0_i32_0 : i32, i32
  }
  func.func @transform_2(%arg0: i32, %arg1: i32) -> (i32, i32) {
    %c0_i32 = arith.constant 0 : i32
    %c0_i32_0 = arith.constant 0 : i32
    %c0_i32_1 = arith.constant 0 : i32
    return %c0_i32, %c0_i32_0 : i32, i32
  }
  func.func @transform_3(%arg0: i32, %arg1: i32) -> (i32, i32) {
    %c0_i32 = arith.constant 0 : i32
    %c0_i32_0 = arith.constant 0 : i32
    %c0_i32_1 = arith.constant 0 : i32
    return %c0_i32, %c0_i32_0 : i32, i32
  }
  func.func @transform_4(%arg0: i32, %arg1: i32) -> (i32, i32, i32) {
    %c0_i32 = arith.constant 0 : i32
    %c0_i32_0 = arith.constant 0 : i32
    return %arg0, %c0_i32, %arg1 : i32, i32, i32
  }
}

</mosaic_0001>

<llo_original>
// kernel: custom-call
$region0: #{custom-call}
  %s0 = inlined_call_operand.hbm [shape: c64[2,4,16,16], index: 0, kind: input, shape index: {}]
  %s1 = inlined_call_operand.vmem [shape: f32[2,4,16,16], index: 1, kind: output, shape index: {}]
  $region1: #{custom-call} parent=0
    #allocation0 [shape = 's32[1]{0}', space=sflag, size = 0x4, scoped, tag = 'scoped memory for custom-call']
    %2 = vsyncpa [#allocation0], 0
    %s4 = sshll.u32 %s0, 4
    %s5 = int_to_ptr.hbm [resolvable:$true] %s4
    %s6 = sshll.u32 %s1, 4
    %s7 = int_to_ptr.vmem [resolvable:$true] %s6
    %9 = dma.hbm_to_vmem [thread:$0]  %s5, 2048, %s7, [#allocation0]
    %11 = dma.done [#allocation0], 2048
    %12 = vsyncpa [#allocation0], 1

// kernel: custom-call.1
$region0: #{custom-call.1}
  %s0 = inlined_call_operand.hbm [shape: c64[2,4,16,16], index: 0, kind: input, shape index: {}]
  %s1 = inlined_call_operand.vmem [shape: f32[2,4,16,16], index: 1, kind: output, shape index: {}]
  %s2 = scalar_lea.hbm %s0, 128
  $region1: #{custom-call.1} parent=0
    #allocation0 [shape = 's32[1]{0}', space=sflag, size = 0x4, scoped, tag = 'scoped memory for custom-call.1']
    %3 = vsyncpa [#allocation0], 0
    %s5 = sshll.u32 %s2, 4
    %s6 = int_to_ptr.hbm [resolvable:$true] %s5
    %s7 = sshll.u32 %s1, 4
    %s8 = int_to_ptr.vmem [resolvable:$true] %s7
    %10 = dma.hbm_to_vmem [thread:$0]  %s6, 2048, %s8, [#allocation0]
    %12 = dma.done [#allocation0], 2048
    %13 = vsyncpa [#allocation0], 1

// kernel: custom-call.2
$region0: #{custom-call.2}
  %s0 = inlined_call_operand.vmem [shape: f32[2,4,16,16], index: 0, kind: input, shape index: {}]
  %s1 = inlined_call_operand.vmem [shape: f32[2,4,16,16], index: 1, kind: input, shape index: {}]
  %s2 = inlined_call_operand.hbm [shape: c64[2,4,16,16], index: 2, kind: output, shape index: {}]
  %s3 = scalar_lea.hbm %s2, 128
  $region1: #{custom-call.2} parent=0
    #allocation0 [shape = 's32[1]{0}', space=sflag, size = 0x4, scoped, tag = 'scoped memory for custom-call.2']
    %4 = vsyncpa [#allocation0], 0
    %s6 = sshll.u32 %s0, 4
    %s7 = int_to_ptr.vmem [resolvable:$true] %s6
    %s8 = sshll.u32 %s2, 4
    %s9 = int_to_ptr.hbm [resolvable:$true] %s8
    %11 = dma.vmem_to_hbm [thread:$0]  %s7, 2048, %s9, [#allocation0]
    %13 = dma.done [#allocation0], 2048
    %14 = vsyncpa [#allocation0], 1
  $region2: #{custom-call.2} parent=0
    #allocation1 [shape = 's32[1]{0}', space=sflag, size = 0x4, scoped, tag = 'scoped memory for custom-call.2']
    %15 = vsyncpa [#allocation1], 0
    %s17 = sshll.u32 %s1, 4
    %s18 = int_to_ptr.vmem [resolvable:$true] %s17
    %s19 = sshll.u32 %s3, 4
    %s20 = int_to_ptr.hbm [resolvable:$true] %s19
    %22 = dma.vmem_to_hbm [thread:$0]  %s18, 2048, %s20, [#allocation1]
    %24 = dma.done [#allocation1], 2048
    %25 = vsyncpa [#allocation1], 1

// kernel: radial_basis_activation.1
$region0: #{radial_basis_activation.1}
  #allocation0 [shape = 'u32[]', space=smem, size = 0x4, offset = 0x4, fixed_abs, tag = 'smem constant byte address 0x4 - core index']
  #allocation1 [shape = 'u32[72,128]{1,0:T(1,128)}', space=vmem, size = 0x9000, scoped, tag = 'internal scratch']
  %s0 = inlined_call_operand.vmem [shape: f32[2,8,256], index: 0, kind: input, shape index: {}]
  %s1 = inlined_call_operand.vmem [shape: f32[96,8], index: 1, kind: input, shape index: {}]
  %s2 = inlined_call_operand.vmem [shape: f32[96,1], index: 2, kind: input, shape index: {}]
  %s3 = inlined_call_operand.vmem [shape: f32[8,96], index: 3, kind: input, shape index: {}]
  %s4 = inlined_call_operand.vmem [shape: f32[2,8,256], index: 4, kind: output, shape index: {}]
  %s5 = sld [smem:[#allocation0]]
  $region49: #{radial_basis_activation.1} parent=0
    _
  %s7 = ssub.s32 1, %s5
  %s8 = scalar_select 0, %s7, %s5
  loop: start=0, step=1, limit=4
  $region2: #{radial_basis_activation.1} parent=0 // loop_pre_header
    _
  $region3: #{radial_basis_activation.1} parent=0 // loop_header
    %s10 = sphi 0, %s14
    %p11 = scmp.ge.s32.totalorder %s10, 4
    %s17 = sphi 0, %s29
    %s18 = sphi 0, %s25
    %s19 = sphi 0, %s17
    %s20 = sphi 0, %s18
    %s21 = sphi 0, %s19
    %s22 = sphi 0, %s20
    %s34 = sphi 0, %s36
    %s37 = sphi 0, %s34
    %s38 = sphi 0, %s37
    %s54 = sphi 0, %s38
    %s58 = sphi 0, %s58
    %s60 = sphi 0, %s58
    %s61 = sphi 0, %s60
    %s75 = sphi 0, %s61
    %s79 = sphi 0, %s79
    %s81 = sphi 0, %s79
    %s82 = sphi 0, %s81
    %s96 = sphi 0, %s82
    %s100 = sphi 0, %s100
    %s102 = sphi 0, %s100
    %s103 = sphi 0, %s102
    %s117 = sphi 0, %s103
    %s125 = sphi 0, %s127
    %s128 = sphi 0, %s125
    %s129 = sphi 0, %s128
    %s145 = sphi 0, %s129
  $region4: #{radial_basis_activation.1} parent=0 // loop_header_branch
    %13 = sbr.rel (%p11) target = $region8
  $region5: #{radial_basis_activation.1} parent=0 // loop_body
    %s15 = ssub.s32 %s10, 1
    %s16 = ssub.s32 %s10, 2
    %s23 = sadd.s32 1, %s18
    %p24 = scmp.ge.s32.totalorder %s23, 1
    %s25 = scalar_select %p24, 0, %s23
    %s26 = sadd.s32 1, %s17
    %s27 = scalar_select %p24, %s26, %s17
    %p28 = scmp.ge.s32.totalorder %s27, 2
    %s29 = scalar_select %p28, 0, %s27
    %s30 = ssub.s32 %s17, %s29
    %s31 = ssub.s32 %s18, %s25
    %s32 = sor.u32 %s30, %s31
    %p33 = scmp.eq.s32.totalorder %s32, 0
    %s35 = sadd.s32 %s34, 1
    %s36 = scalar_select %p33, %s34, %s35
    %p39 = pneg %p33
    %p40 = scmp.eq.s32.totalorder %s10, 1
    %p41 = por %p39, %p40
    %p42 = scmp.ne.s32.totalorder %s34, %s37
    %p43 = scmp.eq.s32.totalorder %s10, 0
    %p44 = por %p42, %p43
    %p45 = scmp.ne.s32.totalorder %s34, %s37
    %p46 = scmp.eq.s32.totalorder %s15, 1
    %p47 = por %p45, %p46
    %p48 = scmp.ne.s32.totalorder %s37, %s38
    %p49 = scmp.eq.s32.totalorder %s15, 0
    %p50 = por %p48, %p49
    %p51 = scmp.ne.s32.totalorder %s37, %s38
    %p52 = scmp.eq.s32.totalorder %s16, 1
    %p53 = por %p51, %p52
    %p55 = scmp.ne.s32.totalorder %s38, %s54
    %p56 = scmp.eq.s32.totalorder %s16, 0
    %p57 = por %p55, %p56
    %s59 = sadd.s32 %s58, 1
    %p62 = scmp.eq.s32.totalorder %s10, 1
    %p63 = scmp.ne.s32.totalorder %s58, %s60
    %p64 = scmp.eq.s32.totalorder %s10, 0
    %p65 = por %p63, %p64
    %p66 = scmp.ne.s32.totalorder %s58, %s60
    %p67 = scmp.eq.s32.totalorder %s15, 1
    %p68 = por %p66, %p67
    %p69 = scmp.ne.s32.totalorder %s60, %s61
    %p70 = scmp.eq.s32.totalorder %s15, 0
    %p71 = por %p69, %p70
    %p72 = scmp.ne.s32.totalorder %s60, %s61
    %p73 = scmp.eq.s32.totalorder %s16, 1
    %p74 = por %p72, %p73
    %p76 = scmp.ne.s32.totalorder %s61, %s75
    %p77 = scmp.eq.s32.totalorder %s16, 0
    %p78 = por %p76, %p77
    %s80 = sadd.s32 %s79, 1
    %p83 = scmp.eq.s32.totalorder %s10, 1
    %p84 = scmp.ne.s32.totalorder %s79, %s81
    %p85 = scmp.eq.s32.totalorder %s10, 0
    %p86 = por %p84, %p85
    %p87 = scmp.ne.s32.totalorder %s79, %s81
    %p88 = scmp.eq.s32.totalorder %s15, 1
    %p89 = por %p87, %p88
    %p90 = scmp.ne.s32.totalorder %s81, %s82
    %p91 = scmp.eq.s32.totalorder %s15, 0
    %p92 = por %p90, %p91
    %p93 = scmp.ne.s32.totalorder %s81, %s82
    %p94 = scmp.eq.s32.totalorder %s16, 1
    %p95 = por %p93, %p94
    %p97 = scmp.ne.s32.totalorder %s82, %s96
    %p98 = scmp.eq.s32.totalorder %s16, 0
    %p99 = por %p97, %p98
    %s101 = sadd.s32 %s100, 1
    %p104 = scmp.eq.s32.totalorder %s10, 1
    %p105 = scmp.ne.s32.totalorder %s100, %s102
    %p106 = scmp.eq.s32.totalorder %s10, 0
    %p107 = por %p105, %p106
    %p108 = scmp.ne.s32.totalorder %s100, %s102
    %p109 = scmp.eq.s32.totalorder %s15, 1
    %p110 = por %p108, %p109
    %p111 = scmp.ne.s32.totalorder %s102, %s103
    %p112 = scmp.eq.s32.totalorder %s15, 0
    %p113 = por %p111, %p112
    %p114 = scmp.ne.s32.totalorder %s102, %s103
    %p115 = scmp.eq.s32.totalorder %s16, 1
    %p116 = por %p114, %p115
    %p118 = scmp.ne.s32.totalorder %s103, %s117
    %p119 = scmp.eq.s32.totalorder %s16, 0
    %p120 = por %p118, %p119
    %s121 = ssub.s32 %s17, %s29
    %s122 = ssub.s32 %s18, %s25
    %s123 = sor.u32 %s121, %s122
    %p124 = scmp.eq.s32.totalorder %s123, 0
    %s126 = sadd.s32 %s125, 1
    %s127 = scalar_select %p124, %s125, %s126
    %p130 = pneg %p124
    %p131 = scmp.eq.s32.totalorder %s10, 1
    %p132 = por %p130, %p131
    %p133 = scmp.ne.s32.totalorder %s125, %s128
    %p134 = scmp.eq.s32.totalorder %s10, 0
    %p135 = por %p133, %p134
    %p136 = scmp.ne.s32.totalorder %s125, %s128
    %p137 = scmp.eq.s32.totalorder %s15, 1
    %p138 = por %p136, %p137
    %p139 = scmp.ne.s32.totalorder %s128, %s129
    %p140 = scmp.eq.s32.totalorder %s15, 0
    %p141 = por %p139, %p140
    %p142 = scmp.ne.s32.totalorder %s128, %s129
    %p143 = scmp.eq.s32.totalorder %s16, 1
    %p144 = por %p142, %p143
    %p146 = scmp.ne.s32.totalorder %s129, %s145
    %p147 = scmp.eq.s32.totalorder %s16, 0
    %p148 = por %p146, %p147
    %p149 = scmp.le.s32.totalorder 1, %s10
    %p150 = scmp.lt.s32.totalorder %s10, 3
    %p151 = pnand %p149, %p150
    %p152 = pneg %p151
    // Predicated region
    $region9: #{radial_basis_activation.1} parent=5 // pred_check
      _
    $region10: #{radial_basis_activation.1} parent=5 // pred_check_branch
      %154 = sbr.rel (%p151) target = $region12
    $region11: #{radial_basis_activation.1} parent=5 // pred_region
      %s155 = ssub.s32 %s10, 1
      // Predicated region
      $region13: #{radial_basis_activation.1} parent=11 // pred_check
        %p156 = pneg %p71
      $region14: #{radial_basis_activation.1} parent=11 // pred_check_branch
        %158 = sbr.rel (%p156) target = $region16
      $region15: #{radial_basis_activation.1} parent=11 // pred_region
        _
      $region16: #{radial_basis_activation.1} parent=11 // pred_fallthru
        _
      // Predicated region
      $region17: #{radial_basis_activation.1} parent=11 // pred_check
        %p159 = pneg %p92
      $region18: #{radial_basis_activation.1} parent=11 // pred_check_branch
        %161 = sbr.rel (%p159) target = $region20
      $region19: #{radial_basis_activation.1} parent=11 // pred_region
        _
      $region20: #{radial_basis_activation.1} parent=11 // pred_fallthru
        _
      // Predicated region
      $region21: #{radial_basis_activation.1} parent=11 // pred_check
        %p162 = pneg %p113
      $region22: #{radial_basis_activation.1} parent=11 // pred_check_branch
        %164 = sbr.rel (%p162) target = $region24
      $region23: #{radial_basis_activation.1} parent=11 // pred_region
        _
      $region24: #{radial_basis_activation.1} parent=11 // pred_fallthru
        _
    $region12: #{radial_basis_activation.1} parent=5 // pred_fallthru
      _
    %p165 = scmp.lt.s32.totalorder %s10, 2
    // Predicated region
    $region25: #{radial_basis_activation.1} parent=5 // pred_check
      %p166 = pneg %p165
    $region26: #{radial_basis_activation.1} parent=5 // pred_check_branch
      %168 = sbr.rel (%p166) target = $region28
    $region27: #{radial_basis_activation.1} parent=5 // pred_region
      // Predicated region
      $region29: #{radial_basis_activation.1} parent=27 // pred_check
        %p169 = pneg %p44
      $region30: #{radial_basis_activation.1} parent=27 // pred_check_branch
        %171 = sbr.rel (%p169) target = $region32
      $region31: #{radial_basis_activation.1} parent=27 // pred_region
        %s172 = smul.u32 2, %s18
        %p173 = scmp.lt.s32.totalorder %s17, 1
        %s174 = scalar_select %p173, %s17, 1
        %p175 = scmp.lt.s32.totalorder %s172, 1
        %s176 = scalar_select %p175, %s172, 1
        %s177 = smul.addr %s174, 2
        %s178 = sadd.s32 %s176, %s177
        %s179 = smul.addr %s178, 8
        %s180 = scalar_lea.vmem %s0, %s179
        %s181 = smul.u32 2, %s18
      $region32: #{radial_basis_activation.1} parent=27 // pred_fallthru
        _
    $region28: #{radial_basis_activation.1} parent=5 // pred_fallthru
      _
    %p182 = scmp.le.s32.totalorder 1, %s10
    %p183 = scmp.lt.s32.totalorder %s10, 3
    %p184 = pnand %p182, %p183
    %p185 = pneg %p184
    // Predicated region
    $region33: #{radial_basis_activation.1} parent=5 // pred_check
      _
    $region34: #{radial_basis_activation.1} parent=5 // pred_check_branch
      %187 = sbr.rel (%p184) target = $region36
    $region35: #{radial_basis_activation.1} parent=5 // pred_region
      %s188 = ssub.s32 %s10, 1
      %s189 = smul.u32 2, %s20
      %p190 = scmp.lt.s32.totalorder %s19, 1
      %s191 = scalar_select %p190, %s19, 1
      %p192 = scmp.lt.s32.totalorder %s189, 1
      %s193 = scalar_select %p192, %s189, 1
      %s194 = smul.addr %s191, 2
      %s195 = sadd.s32 %s193, %s194
      %s196 = smul.addr %s195, 8
      %s197 = scalar_lea.vmem %s0, %s196
      %p198 = pneg %p50
      %p199 = pneg %p47
      %p200 = pneg %p71
      %p201 = pneg %p68
      %p202 = pneg %p92
      %p203 = pneg %p89
      %p204 = pneg %p113
      %p205 = pneg %p110
      %p206 = pneg %p141
      %p207 = pneg %p138
      %s208 = smul.u32 2, %s20
      %p209 = scmp.lt.s32.totalorder %s19, 1
      %s210 = scalar_select %p209, %s19, 1
      %p211 = scmp.lt.s32.totalorder %s208, 1
      %s212 = scalar_select %p211, %s208, 1
      %s213 = smul.addr %s210, 2
      %s214 = sadd.s32 %s212, %s213
      %s215 = smul.addr %s214, 8
      %s216 = scalar_lea.vmem %s4, %s215
      %s217 = smul.u32 2, %s20
      %p218 = scmp.lt.s32.totalorder %s19, 1
      %s219 = scalar_select %p218, %s19, 1
      %p220 = scmp.lt.s32.totalorder %s217, 1
      %s221 = scalar_select %p220, %s217, 1
      %s222 = smul.addr %s219, 2
      %s223 = sadd.s32 %s221, %s222
      %s224 = smul.addr %s223, 8
      %s225 = scalar_lea.vmem %s0, %s224
      %s226 = smul.u32 2, %s20
      %s227 = smul.u32 2, %s20
      %p228 = scmp.lt.s32.totalorder %s19, 1
      %s229 = scalar_select %p228, %s19, 1
      %p230 = scmp.lt.s32.totalorder %s227, 1
      %s231 = scalar_select %p230, %s227, 1
      %s232 = smul.addr %s229, 2
      %s233 = sadd.s32 %s231, %s232
      %s234 = smul.addr %s233, 8
      %s235 = scalar_lea.vmem %s4, %s234
      %s236 = smul.u32 2, %s20
      %v237 = vld [vmem:[%s225] sm:$0xff]
      %v238 = vld [vmem:[%s225 + $0x8] sm:$0xff]
      %v239 = vld [vmem:[%s1] sm:$0xff]
      %v240 = vld [vmem:[%s1 + $0x8] sm:$0xff]
      %v241 = vld [vmem:[%s1 + $0x10] sm:$0xff]
      %v242 = vld [vmem:[%s1 + $0x18] sm:$0xff]
      %v243 = vld [vmem:[%s1 + $0x20] sm:$0xff]
      %v244 = vld [vmem:[%s1 + $0x28] sm:$0xff]
      %v245 = vld [vmem:[%s1 + $0x30] sm:$0xff]
      %v246 = vld [vmem:[%s1 + $0x38] sm:$0xff]
      %v247 = vld [vmem:[%s1 + $0x40] sm:$0xff]
      %v248 = vld [vmem:[%s1 + $0x48] sm:$0xff]
      %v249 = vld [vmem:[%s1 + $0x50] sm:$0xff]
      %v250 = vld [vmem:[%s1 + $0x58] sm:$0xff]
      %v251 = vld [vmem:[%s2] sm:$0xff]
      %v252 = vld [vmem:[%s2 + $0x8] sm:$0xff]
      %v253 = vld [vmem:[%s2 + $0x10] sm:$0xff]
      %v254 = vld [vmem:[%s2 + $0x18] sm:$0xff]
      %v255 = vld [vmem:[%s2 + $0x20] sm:$0xff]
      %v256 = vld [vmem:[%s2 + $0x28] sm:$0xff]
      %v257 = vld [vmem:[%s2 + $0x30] sm:$0xff]
      %v258 = vld [vmem:[%s2 + $0x38] sm:$0xff]
      %v259 = vld [vmem:[%s2 + $0x40] sm:$0xff]
      %v260 = vld [vmem:[%s2 + $0x48] sm:$0xff]
      %v261 = vld [vmem:[%s2 + $0x50] sm:$0xff]
      %v262 = vld [vmem:[%s2 + $0x58] sm:$0xff]
      %264 = vset.pattern.permute.xlu0 0
      %265 = vperm.xlu0 %264, %v251
      %v266 = vpop.permute.xlu0 %265
      %269 = vset.pattern.permute.xlu0 0
      %270 = vperm.xlu0 %269, %v252
      %v271 = vpop.permute.xlu0 %270
      %274 = vset.pattern.permute.xlu0 0
      %275 = vperm.xlu0 %274, %v253
      %v276 = vpop.permute.xlu0 %275
      %279 = vset.pattern.permute.xlu0 0
      %280 = vperm.xlu0 %279, %v254
      %v281 = vpop.permute.xlu0 %280
      %284 = vset.pattern.permute.xlu0 0
      %285 = vperm.xlu0 %284, %v255
      %v286 = vpop.permute.xlu0 %285
      %289 = vset.pattern.permute.xlu0 0
      %290 = vperm.xlu0 %289, %v256
      %v291 = vpop.permute.xlu0 %290
      %294 = vset.pattern.permute.xlu0 0
      %295 = vperm.xlu0 %294, %v257
      %v296 = vpop.permute.xlu0 %295
      %299 = vset.pattern.permute.xlu0 0
      %300 = vperm.xlu0 %299, %v258
      %v301 = vpop.permute.xlu0 %300
      %304 = vset.pattern.permute.xlu0 0
      %305 = vperm.xlu0 %304, %v259
      %v306 = vpop.permute.xlu0 %305
      %309 = vset.pattern.permute.xlu0 0
      %310 = vperm.xlu0 %309, %v260
      %v311 = vpop.permute.xlu0 %310
      %314 = vset.pattern.permute.xlu0 0
      %315 = vperm.xlu0 %314, %v261
      %v316 = vpop.permute.xlu0 %315
      %319 = vset.pattern.permute.xlu0 0
      %320 = vperm.xlu0 %319, %v262
      %v321 = vpop.permute.xlu0 %320
      %vm323 = vcmask 64512
      %v325 = vsel %vm323, %v239, 0
      %v328 = vsel %vm323, %v240, 0
      %v331 = vsel %vm323, %v241, 0
      %v334 = vsel %vm323, %v242, 0
      %v337 = vsel %vm323, %v243, 0
      %v340 = vsel %vm323, %v244, 0
      %v343 = vsel %vm323, %v245, 0
      %v346 = vsel %vm323, %v246, 0
      %v349 = vsel %vm323, %v247, 0
      %v352 = vsel %vm323, %v248, 0
      %v355 = vsel %vm323, %v249, 0
      %v358 = vsel %vm323, %v250, 0
      %360 = vmatpush.msra.mxu0 0.0
      %361 = vmatpush.msra.mxu0 0.0
      %362 = vmatpush.msra.mxu0 0.0
      %363 = vmatpush.msra.mxu0 0.0
      %364 = vmatpush.msra.mxu0 0.0
      %365 = vmatpush.msra.mxu0 0.0
      %366 = vmatpush.msra.mxu0 0.0
      %367 = vmatpush.msra.mxu0 0.0
      %368 = vmatpush.msra.mxu0 0.0
      %369 = vmatpush.msra.mxu0 0.0
      %370 = vmatpush.msra.mxu0 0.0
      %371 = vmatpush.msra.mxu0 0.0
      %372 = vmatpush.msra.mxu0 0.0
      %373 = vmatpush.msra.mxu0 0.0
      %374 = vmatpush.msra.mxu0 0.0
      %375 = vmatpush.msra.mxu0 %v237
      %376 = vmatmul.f32.gmra.mxu0 %v325
      %v377 = vpop.f32.mrf.mxu0
      %v378 = vadd.f32 %v266, %v377
      %379 = vmatmul.f32.gmra.mxu0 %v328
      %v380 = vpop.f32.mrf.mxu0
      %v381 = vadd.f32 %v271, %v380
      %382 = vmatmul.f32.gmra.mxu0 %v331
      %v383 = vpop.f32.mrf.mxu0
      %v384 = vadd.f32 %v276, %v383
      %385 = vmatmul.f32.gmra.mxu0 %v334
      %v386 = vpop.f32.mrf.mxu0
      %v387 = vadd.f32 %v281, %v386
      %388 = vmatmul.f32.gmra.mxu0 %v337
      %v389 = vpop.f32.mrf.mxu0
      %v390 = vadd.f32 %v286, %v389
      %391 = vmatmul.f32.gmra.mxu0 %v340
      %v392 = vpop.f32.mrf.mxu0
      %v393 = vadd.f32 %v291, %v392
      %394 = vmatmul.f32.gmra.mxu0 %v343
      %v395 = vpop.f32.mrf.mxu0
      %v396 = vadd.f32 %v296, %v395
      %397 = vmatmul.f32.gmra.mxu0 %v346
      %v398 = vpop.f32.mrf.mxu0
      %v399 = vadd.f32 %v301, %v398
      %400 = vmatmul.f32.gmra.mxu0 %v349
      %v401 = vpop.f32.mrf.mxu0
      %v402 = vadd.f32 %v306, %v401
      %403 = vmatmul.f32.gmra.mxu0 %v352
      %v404 = vpop.f32.mrf.mxu0
      %v405 = vadd.f32 %v311, %v404
      %406 = vmatmul.f32.gmra.mxu0 %v355
      %v407 = vpop.f32.mrf.mxu0
      %v408 = vadd.f32 %v316, %v407
      %409 = vmatmul.f32.gmra.mxu0 %v358
      %v410 = vpop.f32.mrf.mxu0
      %v411 = vadd.f32 %v321, %v410
      %412 = vdwg.mxu0
      %413 = vmatpush.msra.mxu0 0.0
      %414 = vmatpush.msra.mxu0 0.0
      %415 = vmatpush.msra.mxu0 0.0
      %416 = vmatpush.msra.mxu0 0.0
      %417 = vmatpush.msra.mxu0 0.0
      %418 = vmatpush.msra.mxu0 0.0
      %419 = vmatpush.msra.mxu0 0.0
      %420 = vmatpush.msra.mxu0 0.0
      %421 = vmatpush.msra.mxu0 0.0
      %422 = vmatpush.msra.mxu0 0.0
      %423 = vmatpush.msra.mxu0 0.0
      %424 = vmatpush.msra.mxu0 0.0
      %425 = vmatpush.msra.mxu0 0.0
      %426 = vmatpush.msra.mxu0 0.0
      %427 = vmatpush.msra.mxu0 0.0
      %428 = vmatpush.msra.mxu0 %v238
      %429 = vmatmul.f32.gmra.mxu0 %v325
      %v430 = vpop.f32.mrf.mxu0
      %v431 = vadd.f32 %v266, %v430
      %432 = vmatmul.f32.gmra.mxu0 %v328
      %v433 = vpop.f32.mrf.mxu0
      %v434 = vadd.f32 %v271, %v433
      %435 = vmatmul.f32.gmra.mxu0 %v331
      %v436 = vpop.f32.mrf.mxu0
      %v437 = vadd.f32 %v276, %v436
      %438 = vmatmul.f32.gmra.mxu0 %v334
      %v439 = vpop.f32.mrf.mxu0
      %v440 = vadd.f32 %v281, %v439
      %441 = vmatmul.f32.gmra.mxu0 %v337
      %v442 = vpop.f32.mrf.mxu0
      %v443 = vadd.f32 %v286, %v442
      %444 = vmatmul.f32.gmra.mxu0 %v340
      %v445 = vpop.f32.mrf.mxu0
      %v446 = vadd.f32 %v291, %v445
      %447 = vmatmul.f32.gmra.mxu0 %v343
      %v448 = vpop.f32.mrf.mxu0
      %v449 = vadd.f32 %v296, %v448
      %450 = vmatmul.f32.gmra.mxu0 %v346
      %v451 = vpop.f32.mrf.mxu0
      %v452 = vadd.f32 %v301, %v451
      %453 = vmatmul.f32.gmra.mxu0 %v349
      %v454 = vpop.f32.mrf.mxu0
      %v455 = vadd.f32 %v306, %v454
      %456 = vmatmul.f32.gmra.mxu0 %v352
      %v457 = vpop.f32.mrf.mxu0
      %v458 = vadd.f32 %v311, %v457
      %459 = vmatmul.f32.gmra.mxu0 %v355
      %v460 = vpop.f32.mrf.mxu0
      %v461 = vadd.f32 %v316, %v460
      %462 = vmatmul.f32.gmra.mxu0 %v358
      %v463 = vpop.f32.mrf.mxu0
      %v464 = vadd.f32 %v321, %v463
      %465 = vdwg.mxu0
      %v466 = vmul.f32 %v378, %v378
      %v467 = vmul.f32 %v431, %v431
      %v468 = vmul.f32 %v381, %v381
      %v469 = vmul.f32 %v434, %v434
      %v470 = vmul.f32 %v384, %v384
      %v471 = vmul.f32 %v437, %v437
      %v472 = vmul.f32 %v387, %v387
      %v473 = vmul.f32 %v440, %v440
      %v474 = vmul.f32 %v390, %v390
      %v475 = vmul.f32 %v443, %v443
      %v476 = vmul.f32 %v393, %v393
      %v477 = vmul.f32 %v446, %v446
      %v478 = vmul.f32 %v396, %v396
      %v479 = vmul.f32 %v449, %v449
      %v480 = vmul.f32 %v399, %v399
      %v481 = vmul.f32 %v452, %v452
      %v482 = vmul.f32 %v402, %v402
      %v483 = vmul.f32 %v455, %v455
      %v484 = vmul.f32 %v405, %v405
      %v485 = vmul.f32 %v458, %v458
      %v486 = vmul.f32 %v408, %v408
      %v487 = vmul.f32 %v461, %v461
      %v488 = vmul.f32 %v411, %v411
      %v489 = vmul.f32 %v464, %v464
      %v490 = vsub.f32 0.0, %v466
      %v491 = vsub.f32 0.0, %v467
      %v492 = vsub.f32 0.0, %v468
      %v493 = vsub.f32 0.0, %v469
      %v494 = vsub.f32 0.0, %v470
      %v495 = vsub.f32 0.0, %v471
      %v496 = vsub.f32 0.0, %v472
      %v497 = vsub.f32 0.0, %v473
      %v498 = vsub.f32 0.0, %v474
      %v499 = vsub.f32 0.0, %v475
      %v500 = vsub.f32 0.0, %v476
      %v501 = vsub.f32 0.0, %v477
      %v502 = vsub.f32 0.0, %v478
      %v503 = vsub.f32 0.0, %v479
      %v504 = vsub.f32 0.0, %v480
      %v505 = vsub.f32 0.0, %v481
      %v506 = vsub.f32 0.0, %v482
      %v507 = vsub.f32 0.0, %v483
      %v508 = vsub.f32 0.0, %v484
      %v509 = vsub.f32 0.0, %v485
      %v510 = vsub.f32 0.0, %v486
      %v511 = vsub.f32 0.0, %v487
      %v512 = vsub.f32 0.0, %v488
      %v513 = vsub.f32 0.0, %v489
      %v514 = vmul.f32 %v490, 1.442695
      %v515 = vpow.pop %v514
      %v516 = vmul.f32 %v491, 1.442695
      %v517 = vpow.pop %v516
      %v518 = vmul.f32 %v492, 1.442695
      %v519 = vpow.pop %v518
      %v520 = vmul.f32 %v493, 1.442695
      %v521 = vpow.pop %v520
      %v522 = vmul.f32 %v494, 1.442695
      %v523 = vpow.pop %v522
      %v524 = vmul.f32 %v495, 1.442695
      %v525 = vpow.pop %v524
      %v526 = vmul.f32 %v496, 1.442695
      %v527 = vpow.pop %v526
      %v528 = vmul.f32 %v497, 1.442695
      %v529 = vpow.pop %v528
      %v530 = vmul.f32 %v498, 1.442695
      %v531 = vpow.pop %v530
      %v532 = vmul.f32 %v499, 1.442695
      %v533 = vpow.pop %v532
      %v534 = vmul.f32 %v500, 1.442695
      %v535 = vpow.pop %v534
      %v536 = vmul.f32 %v501, 1.442695
      %v537 = vpow.pop %v536
      %v538 = vmul.f32 %v502, 1.442695
      %v539 = vpow.pop %v538
      %v540 = vmul.f32 %v503, 1.442695
      %v541 = vpow.pop %v540
      %v542 = vmul.f32 %v504, 1.442695
      %v543 = vpow.pop %v542
      %v544 = vmul.f32 %v505, 1.442695
      %v545 = vpow.pop %v544
      %v546 = vmul.f32 %v506, 1.442695
      %v547 = vpow.pop %v546
      %v548 = vmul.f32 %v507, 1.442695
      %v549 = vpow.pop %v548
      %v550 = vmul.f32 %v508, 1.442695
      %v551 = vpow.pop %v550
      %v552 = vmul.f32 %v509, 1.442695
      %v553 = vpow.pop %v552
      %v554 = vmul.f32 %v510, 1.442695
      %v555 = vpow.pop %v554
      %v556 = vmul.f32 %v511, 1.442695
      %v557 = vpow.pop %v556
      %v558 = vmul.f32 %v512, 1.442695
      %v559 = vpow.pop %v558
      %v560 = vmul.f32 %v513, 1.442695
      %v561 = vpow.pop %v560
      %v562 = vld [vmem:[%s3] sm:$0xff]
      %vm563 = vcmask 785408
      %v565 = vsel %vm563, %v562, 0
      %567 = vmatpush.msra.mxu0 0.0
      %568 = vmatpush.msra.mxu0 0.0
      %569 = vmatpush.msra.mxu0 0.0
      %570 = vmatpush.msra.mxu0 0.0
      %571 = vmatpush.msra.mxu0 %v559
      %572 = vmatpush.msra.mxu0 %v555
      %573 = vmatpush.msra.mxu0 %v551
      %574 = vmatpush.msra.mxu0 %v547
      %575 = vmatpush.msra.mxu0 %v543
      %576 = vmatpush.msra.mxu0 %v539
      %577 = vmatpush.msra.mxu0 %v535
      %578 = vmatpush.msra.mxu0 %v531
      %579 = vmatpush.msra.mxu0 %v527
      %580 = vmatpush.msra.mxu0 %v523
      %581 = vmatpush.msra.mxu0 %v519
      %582 = vmatpush.msra.mxu0 %v515
      %583 = vmatmul.f32.gmra.mxu0 %v565
      %v584 = vpop.f32.mrf.mxu0
      %v585 = vadd.f32 0.0, %v584
      %586 = vdwg.mxu0
      %587 = vmatpush.msra.mxu0 0.0
      %588 = vmatpush.msra.mxu0 0.0
      %589 = vmatpush.msra.mxu0 0.0
      %590 = vmatpush.msra.mxu0 0.0
      %591 = vmatpush.msra.mxu0 %v561
      %592 = vmatpush.msra.mxu0 %v557
      %593 = vmatpush.msra.mxu0 %v553
      %594 = vmatpush.msra.mxu0 %v549
      %595 = vmatpush.msra.mxu0 %v545
      %596 = vmatpush.msra.mxu0 %v541
      %597 = vmatpush.msra.mxu0 %v537
      %598 = vmatpush.msra.mxu0 %v533
      %599 = vmatpush.msra.mxu0 %v529
      %600 = vmatpush.msra.mxu0 %v525
      %601 = vmatpush.msra.mxu0 %v521
      %602 = vmatpush.msra.mxu0 %v517
      %603 = vmatmul.f32.gmra.mxu0 %v565
      %v604 = vpop.f32.mrf.mxu0
      %v605 = vadd.f32 0.0, %v604
      %606 = vdwg.mxu0
      %607 = vst [vmem:[%s235] sm:$0xff] %v585
      %608 = vst [vmem:[%s235 + $0x8] sm:$0xff] %v605
      %s609 = smul.u32 2, %s20
      %p610 = scmp.lt.s32.totalorder %s19, 1
      %s611 = scalar_select %p610, %s19, 1
      %p612 = scmp.lt.s32.totalorder %s609, 1
      %s613 = scalar_select %p612, %s609, 1
      %s614 = smul.addr %s611, 2
      %s615 = sadd.s32 %s613, %s614
      %s616 = smul.addr %s615, 8
      %s617 = scalar_lea.vmem %s4, %s616
      // Predicated region
      $region37: #{radial_basis_activation.1} parent=35 // pred_check
        %p618 = pneg %p138
      $region38: #{radial_basis_activation.1} parent=35 // pred_check_branch
        %620 = sbr.rel (%p618) target = $region40
      $region39: #{radial_basis_activation.1} parent=35 // pred_region
        %s621 = smul.u32 2, %s20
      $region40: #{radial_basis_activation.1} parent=35 // pred_fallthru
        _
    $region36: #{radial_basis_activation.1} parent=5 // pred_fallthru
      _
    %p622 = scmp.le.s32.totalorder 2, %s10
    // Predicated region
    $region41: #{radial_basis_activation.1} parent=5 // pred_check
      %p623 = pneg %p622
    $region42: #{radial_basis_activation.1} parent=5 // pred_check_branch
      %625 = sbr.rel (%p623) target = $region44
    $region43: #{radial_basis_activation.1} parent=5 // pred_region
      %s626 = ssub.s32 %s10, 2
      // Predicated region
      $region45: #{radial_basis_activation.1} parent=43 // pred_check
        %p627 = pneg %p144
      $region46: #{radial_basis_activation.1} parent=43 // pred_check_branch
        %629 = sbr.rel (%p627) target = $region48
      $region47: #{radial_basis_activation.1} parent=43 // pred_region
        %s630 = smul.u32 2, %s22
        %p631 = scmp.lt.s32.totalorder %s21, 1
        %s632 = scalar_select %p631, %s21, 1
        %p633 = scmp.lt.s32.totalorder %s630, 1
        %s634 = scalar_select %p633, %s630, 1
        %s635 = smul.addr %s632, 2
        %s636 = sadd.s32 %s634, %s635
        %s637 = smul.addr %s636, 8
        %s638 = scalar_lea.vmem %s4, %s637
      $region48: #{radial_basis_activation.1} parent=43 // pred_fallthru
        _
    $region44: #{radial_basis_activation.1} parent=5 // pred_fallthru
      _
  $region6: #{radial_basis_activation.1} parent=0 // loop_footer
    %s14 = sadd.s32 1, %s10
  $region7: #{radial_basis_activation.1} parent=0 // loop_footer_branch
    %9 = sbr.rel target = $region3
  $region8: #{radial_basis_activation.1} parent=0 // loop_exit
    _

</llo_original>
